<compile_context>
chip_gen: v7x
topology: tpu7x:2x2x1
jax: 0.10.0
libtpu: 0.0.40
codegen_flags: <defaults>
</compile_context>

<pallas_src>
import jax
import jax.numpy as jnp
from jax.experimental import pallas as pl
from jax.experimental.pallas import tpu as pltpu

n_embd = 64
hidden = 4 * n_embd  # 256


def _round_up(a, b):
    return ((a + b - 1) // b) * b


def ffn_kernel(x_ref, w1_ref, b1_ref, w2_ref, b2_ref, o_ref):
    # x_ref: (tm, n_embd) bf16, w1: (n_embd, hidden) bf16, b1: (1, hidden) f32
    # w2: (hidden, n_embd) bf16, b2: (1, n_embd) f32, o_ref: (tm, n_embd) f32
    x = x_ref[...]
    h = jnp.dot(x, w1_ref[...], preferred_element_type=jnp.float32)
    h = jnp.maximum(h + b1_ref[...], 0.0)           # f32 bias + ReLU (VPU)
    y = jnp.dot(h.astype(jnp.bfloat16), w2_ref[...],
                preferred_element_type=jnp.float32)
    y = y + b2_ref[...]
    # Dropout(p=0.0) is the identity -> no-op.
    # TODO(synk): training-time dropout (p>0) would need pltpu.prng_* masking.
    o_ref[...] = y.astype(o_ref.dtype)


def feedforward(x, w1, b1, w2, b2, *, tm=1024):
    """x: (B, T, n_embd) float32 -> (B, T, n_embd) float32."""
    B, T, C = x.shape
    assert C == n_embd
    assert tm % 8 == 0, "row tile must be a multiple of 8 (sublanes)"
    M = B * T

    # bf16 matmul operands (halves HBM traffic, MXU-native); f32 accumulation.
    x2 = x.reshape(M, C).astype(jnp.bfloat16)
    w1b = w1.astype(jnp.bfloat16)
    w2b = w2.astype(jnp.bfloat16)
    b1f = b1.astype(jnp.float32)
    b2f = b2.astype(jnp.float32)

    # Bounded tile; pad M up to a multiple of the tile so the remainder rows
    # are computed (padding rows are sliced off afterwards).
    tm_eff = min(tm, _round_up(M, 8))
    Mp = _round_up(M, tm_eff)
    if Mp != M:
        x2 = jnp.pad(x2, ((0, Mp - M), (0, 0)))

    grid = (Mp // tm_eff,)

    out = pl.pallas_call(
        ffn_kernel,
        out_shape=jax.ShapeDtypeStruct((Mp, C), x.dtype),
        grid_spec=pltpu.PrefetchScalarGridSpec(
            num_scalar_prefetch=0,
            grid=grid,
            in_specs=[
                pl.BlockSpec((tm_eff, C), lambda i: (i, 0)),      # x rows
                pl.BlockSpec((C, hidden), lambda i: (0, 0)),      # W1 (resident)
                pl.BlockSpec((1, hidden), lambda i: (0, 0)),      # b1
                pl.BlockSpec((hidden, C), lambda i: (0, 0)),      # W2 (resident)
                pl.BlockSpec((1, C), lambda i: (0, 0)),           # b2
            ],
            out_specs=pl.BlockSpec((tm_eff, C), lambda i: (i, 0)),
        ),
        compiler_params=pltpu.CompilerParams(
            dimension_semantics=("parallel",),     # megacore-shard on v7x
            vmem_limit_bytes=32 * 1024 * 1024,     # explicit, portable sizing
        ),
    )(x2, w1b, b1f, w2b, b2f)

    if Mp != M:
        out = out[:M]
    return out.reshape(B, T, C)


def init_params(key):
    """Deterministic init matching nn.Linear shapes (U(-1/sqrt(fan_in), +))."""
    k1, k2, k3, k4 = jax.random.split(key, 4)
    lim1 = 1.0 / jnp.sqrt(jnp.float32(n_embd))
    lim2 = 1.0 / jnp.sqrt(jnp.float32(hidden))
    # PyTorch stores weight as (out, in); we keep the math-friendly (in, out).
    w1 = jax.random.uniform(k1, (n_embd, hidden), jnp.float32, -lim1, lim1)
    b1 = jax.random.uniform(k2, (1, hidden), jnp.float32, -lim1, lim1)
    w2 = jax.random.uniform(k3, (hidden, n_embd), jnp.float32, -lim2, lim2)
    b2 = jax.random.uniform(k4, (1, n_embd), jnp.float32, -lim2, lim2)
    return w1, b1, w2, b2


def ref_ffn(x, w1, b1, w2, b2):
    """Plain-JAX reference with the same bf16-operand / f32-accum math."""
    xb = x.reshape(-1, n_embd).astype(jnp.bfloat16)
    h = jnp.dot(xb, w1.astype(jnp.bfloat16),
                preferred_element_type=jnp.float32) + b1
    h = jnp.maximum(h, 0.0).astype(jnp.bfloat16)
    y = jnp.dot(h, w2.astype(jnp.bfloat16),
                preferred_element_type=jnp.float32) + b2
    return y.reshape(x.shape).astype(x.dtype)


if __name__ == "__main__":
    key = jax.random.PRNGKey(0)
    kx, kp = jax.random.split(key)
    w1, b1, w2, b2 = init_params(kp)

    # Case 1: the module's small shape (B=2, T=8 -> M=16, single-tile grid).
    x = jax.random.normal(kx, (2, 8, n_embd), jnp.float32)
    y = jax.block_until_ready(feedforward(x, w1, b1, w2, b2))
    ref = ref_ffn(x, w1, b1, w2, b2)
    assert y.shape == (2, 8, n_embd)
    assert jnp.allclose(y, ref, atol=1e-3, rtol=1e-3)

    # Case 2: M not a multiple of the tile (exercises padding + multi-step grid).
    x2 = jax.random.normal(jax.random.PRNGKey(1), (3, 7, n_embd), jnp.float32)
    y2 = jax.block_until_ready(feedforward(x2, w1, b1, w2, b2, tm=8))
    ref2 = ref_ffn(x2, w1, b1, w2, b2)
    assert y2.shape == (3, 7, n_embd)
    assert jnp.allclose(y2, ref2, atol=1e-3, rtol=1e-3)

    print("KERNEL_OK")
</pallas_src>

<mosaic_0001>
module attributes {stable_mosaic.version = 11 : i64} {
  func.func @ffn_kernel(%arg0: i32, %arg1: memref<16x64xbf16, #tpu.memory_space<vmem>>, %arg2: memref<64x256xbf16, #tpu.memory_space<vmem>>, %arg3: memref<1x256xf32, #tpu.memory_space<vmem>>, %arg4: memref<256x64xbf16, #tpu.memory_space<vmem>>, %arg5: memref<1x64xf32, #tpu.memory_space<vmem>>, %arg6: memref<16x64xf32, #tpu.memory_space<vmem>>) attributes {dimension_semantics = [#tpu.dimension_semantics<parallel>], iteration_bounds = array<i64: 1>, scalar_prefetch = 0 : i64, scratch_operands = 0 : i64, tpu.core_type = #tpu.core_type<tc>, window_params = [{transform_indices = @transform_0, window_bounds = array<i64: 16, 64>}, {pipeline_mode = #tpu.pipeline_mode<synchronous>, transform_indices = @transform_1, window_bounds = array<i64: 64, 256>}, {pipeline_mode = #tpu.pipeline_mode<synchronous>, transform_indices = @transform_2, window_bounds = array<i64: 1, 256>}, {pipeline_mode = #tpu.pipeline_mode<synchronous>, transform_indices = @transform_3, window_bounds = array<i64: 256, 64>}, {pipeline_mode = #tpu.pipeline_mode<synchronous>, transform_indices = @transform_4, window_bounds = array<i64: 1, 64>}, {transform_indices = @transform_5, window_bounds = array<i64: 16, 64>}]} {
    %c0 = arith.constant 0 : index
    %c0_0 = arith.constant 0 : index
    %0 = vector.load %arg1[%c0, %c0_0] : memref<16x64xbf16, #tpu.memory_space<vmem>>, vector<16x64xbf16>
    %c0_1 = arith.constant 0 : index
    %c0_2 = arith.constant 0 : index
    %1 = vector.load %arg2[%c0_1, %c0_2] : memref<64x256xbf16, #tpu.memory_space<vmem>>, vector<64x256xbf16>
    %cst = arith.constant dense<0.000000e+00> : vector<16x256xf32>
    %2 = tpu.matmul %0, %1, %cst {dimension_numbers = #tpu.dot_dimension_numbers<[1], [0], [0], [1], [0, 0, 1, 1], [], []>} : vector<16x64xbf16>, vector<64x256xbf16>, vector<16x256xf32> -> vector<16x256xf32>
    %c0_3 = arith.constant 0 : index
    %c0_4 = arith.constant 0 : index
    %3 = vector.load %arg3[%c0_3, %c0_4] : memref<1x256xf32, #tpu.memory_space<vmem>>, vector<1x256xf32>
    %4 = vector.broadcast %3 : vector<1x256xf32> to vector<16x256xf32>
    %5 = arith.addf %2, %4 : vector<16x256xf32>
    %cst_5 = arith.constant 0.000000e+00 : f32
    %6 = vector.broadcast %cst_5 : f32 to vector<16x256xf32>
    %7 = arith.maximumf %5, %6 : vector<16x256xf32>
    %8 = arith.truncf %7 : vector<16x256xf32> to vector<16x256xbf16>
    %c0_6 = arith.constant 0 : index
    %c0_7 = arith.constant 0 : index
    %9 = vector.load %arg4[%c0_6, %c0_7] : memref<256x64xbf16, #tpu.memory_space<vmem>>, vector<256x64xbf16>
    %cst_8 = arith.constant dense<0.000000e+00> : vector<16x64xf32>
    %10 = tpu.matmul %8, %9, %cst_8 {dimension_numbers = #tpu.dot_dimension_numbers<[1], [0], [0], [1], [0, 0, 1, 1], [], []>} : vector<16x256xbf16>, vector<256x64xbf16>, vector<16x64xf32> -> vector<16x64xf32>
    %c0_9 = arith.constant 0 : index
    %c0_10 = arith.constant 0 : index
    %11 = vector.load %arg5[%c0_9, %c0_10] : memref<1x64xf32, #tpu.memory_space<vmem>>, vector<1x64xf32>
    %12 = vector.broadcast %11 : vector<1x64xf32> to vector<16x64xf32>
    %13 = arith.addf %10, %12 : vector<16x64xf32>
    %c0_11 = arith.constant 0 : index
    %c0_12 = arith.constant 0 : index
    %14 = vector.load %arg6[%c0_11, %c0_12] : memref<16x64xf32, #tpu.memory_space<vmem>>, vector<16x64xf32>
    tpu.vector_store %arg6[%c0_11, %c0_12], %13 {strides = array<i32>} : memref<16x64xf32, #tpu.memory_space<vmem>>, vector<16x64xf32>,
    return
  }
  func.func @transform_0(%arg0: i32) -> (i32, i32) {
    %c0_i32 = arith.constant 0 : i32
    %c0_i32_0 = arith.constant 0 : i32
    return %arg0, %c0_i32 : i32, i32
  }
  func.func @transform_1(%arg0: i32) -> (i32, i32) {
    %c0_i32 = arith.constant 0 : i32
    %c0_i32_0 = arith.constant 0 : i32
    %c0_i32_1 = arith.constant 0 : i32
    return %c0_i32, %c0_i32_0 : i32, i32
  }
  func.func @transform_2(%arg0: i32) -> (i32, i32) {
    %c0_i32 = arith.constant 0 : i32
    %c0_i32_0 = arith.constant 0 : i32
    %c0_i32_1 = arith.constant 0 : i32
    return %c0_i32, %c0_i32_0 : i32, i32
  }
  func.func @transform_3(%arg0: i32) -> (i32, i32) {
    %c0_i32 = arith.constant 0 : i32
    %c0_i32_0 = arith.constant 0 : i32
    %c0_i32_1 = arith.constant 0 : i32
    return %c0_i32, %c0_i32_0 : i32, i32
  }
  func.func @transform_4(%arg0: i32) -> (i32, i32) {
    %c0_i32 = arith.constant 0 : i32
    %c0_i32_0 = arith.constant 0 : i32
    %c0_i32_1 = arith.constant 0 : i32
    return %c0_i32, %c0_i32_0 : i32, i32
  }
  func.func @transform_5(%arg0: i32) -> (i32, i32) {
    %c0_i32 = arith.constant 0 : i32
    %c0_i32_0 = arith.constant 0 : i32
    return %arg0, %c0_i32 : i32, i32
  }
}

</mosaic_0001>

<llo_original>
// kernel: tpu_custom_call.1
$region0: #{tpu_custom_call.1}
  #allocation0 [shape = 'u32[]', space=smem, size = 0x4, offset = 0x4, fixed_abs, tag = 'smem constant byte address 0x4 - core index']
  #allocation1 [shape = 'u32[144,128]{1,0:T(1,128)}', space=vmem, size = 0x12000, scoped, tag = 'internal scratch']
  %s0 = inlined_call_operand.vmem [shape: bf16[16,64], index: 0, kind: input, shape index: {}]
  %s1 = inlined_call_operand.vmem [shape: bf16[64,256], index: 1, kind: input, shape index: {}]
  %s2 = inlined_call_operand.vmem [shape: f32[1,256], index: 2, kind: input, shape index: {}]
  %s3 = inlined_call_operand.vmem [shape: bf16[256,64], index: 3, kind: input, shape index: {}]
  %s4 = inlined_call_operand.vmem [shape: f32[1,64], index: 4, kind: input, shape index: {}]
  %s5 = inlined_call_operand.hbm [shape: f32[16,64], index: 5, kind: output, shape index: {}]
  %s6 = sld [smem:[#allocation0]]
  $region30: #{tpu_custom_call.1} parent=0
    _
  %s8 = ssub.s32 1, %s6
  %s9 = scalar_select 0, %s8, %s6
  $region1: #{tpu_custom_call.1} parent=0
    #allocation2 [shape = 'u8[8192]{0}', space=vmem, size = 0x2000, scoped, tag = 'output window, operand 0, single buffered']
    #allocation3 [shape = 's32[1]{0}', space=sflag, size = 0x4, scoped, tag = 'scoped memory for tpu_custom_call.1']
    %10 = vsyncpa [#allocation3], 0
    // Predicated region
    $region2: #{tpu_custom_call.1} parent=1 // pred_check
      _
    $region3: #{tpu_custom_call.1} parent=1 // pred_check_branch
      %12 = sbr.rel (0) target = $region5
    $region4: #{tpu_custom_call.1} parent=1 // pred_region
      _
    $region5: #{tpu_custom_call.1} parent=1 // pred_fallthru
      _
    // Predicated region
    $region6: #{tpu_custom_call.1} parent=1 // pred_check
      _
    $region7: #{tpu_custom_call.1} parent=1 // pred_check_branch
      %14 = sbr.rel (0) target = $region9
    $region8: #{tpu_custom_call.1} parent=1 // pred_region
      _
    $region9: #{tpu_custom_call.1} parent=1 // pred_fallthru
      _
    // Predicated region
    $region10: #{tpu_custom_call.1} parent=1 // pred_check
      _
    $region11: #{tpu_custom_call.1} parent=1 // pred_check_branch
      %16 = sbr.rel (0) target = $region13
    $region12: #{tpu_custom_call.1} parent=1 // pred_region
      _
    $region13: #{tpu_custom_call.1} parent=1 // pred_fallthru
      _
    // Predicated region
    $region14: #{tpu_custom_call.1} parent=1 // pred_check
      _
    $region15: #{tpu_custom_call.1} parent=1 // pred_check_branch
      %18 = sbr.rel (0) target = $region17
    $region16: #{tpu_custom_call.1} parent=1 // pred_region
      _
    $region17: #{tpu_custom_call.1} parent=1 // pred_fallthru
      _
    // Predicated region
    $region18: #{tpu_custom_call.1} parent=1 // pred_check
      _
    $region19: #{tpu_custom_call.1} parent=1 // pred_check_branch
      %20 = sbr.rel (0) target = $region21
    $region20: #{tpu_custom_call.1} parent=1 // pred_region
      _
    $region21: #{tpu_custom_call.1} parent=1 // pred_fallthru
      _
    %v22 = vld [vmem:[%s0] sm:$0xf]
    %v23 = vld [vmem:[%s0 + $0x4] sm:$0xf]
    %v24 = vld [vmem:[%s1] sm:$0xff]
    %v25 = vld [vmem:[%s1 + $0x8] sm:$0xff]
    %v26 = vld [vmem:[%s1 + $0x10] sm:$0xff]
    %v27 = vld [vmem:[%s1 + $0x18] sm:$0xff]
    %v28 = vld [vmem:[%s1 + $0x20] sm:$0xff]
    %v29 = vld [vmem:[%s1 + $0x28] sm:$0xff]
    %v30 = vld [vmem:[%s1 + $0x30] sm:$0xff]
    %v31 = vld [vmem:[%s1 + $0x38] sm:$0xff]
    %v32 = vld [vmem:[%s2] sm:$0x3]
    %v34 = vlaneseq
    %v35 = vshrl.u32 %v34, 7
    %v36 = vsub.s32 0, %v35
    %v37 = vrot.slane %v32, %v36
    %v38 = vlaneseq
    %v39 = vshrl.u32 %v38, 7
    %v40 = vsub.s32 1, %v39
    %v41 = vrot.slane %v32, %v40
    %v46 = vunpack.c.l.b16 %v22
    %v47 = vunpack.c.l.b16 %v23
    %v48 = vpack.c.b16 %v47, %v46
    %v57 = vunpack.c.l.b16 %v24
    %v58 = vunpack.c.h.b16 %v24
    %v59 = vunpack.c.l.b16 %v25
    %v60 = vunpack.c.h.b16 %v25
    %v61 = vunpack.c.l.b16 %v26
    %v62 = vunpack.c.h.b16 %v26
    %v63 = vunpack.c.l.b16 %v27
    %v64 = vunpack.c.h.b16 %v27
    %v65 = vunpack.c.l.b16 %v28
    %v66 = vunpack.c.h.b16 %v28
    %v67 = vunpack.c.l.b16 %v29
    %v68 = vunpack.c.h.b16 %v29
    %v69 = vunpack.c.l.b16 %v30
    %v70 = vunpack.c.h.b16 %v30
    %v71 = vunpack.c.l.b16 %v31
    %v72 = vunpack.c.h.b16 %v31
    %v73 = vpack.c.b16 %v59, %v57
    %v74 = vpack.c.b16 %v60, %v58
    %v75 = vpack.c.b16 %v63, %v61
    %v76 = vpack.c.b16 %v64, %v62
    %v77 = vpack.c.b16 %v67, %v65
    %v78 = vpack.c.b16 %v68, %v66
    %v79 = vpack.c.b16 %v71, %v69
    %v80 = vpack.c.b16 %v72, %v70
    %vm89 = vcmask 523264
    %v91 = vsel %vm89, %v48, 0
    %93 = vmatprep.subr.bf16.mxu0 %v74
    %94 = vmatpush1.bf16.msra.mxu0 %v73
    %95 = vmatprep.subr.bf16.mxu0 %v76
    %96 = vmatpush1.bf16.msra.mxu0 %v75
    %97 = vmatprep.subr.bf16.mxu0 %v78
    %98 = vmatpush1.bf16.msra.mxu0 %v77
    %99 = vmatprep.subr.bf16.mxu0 %v80
    %100 = vmatpush1.bf16.msra.mxu0 %v79
    %101 = vmatprep.subr.bf16.mxu0 0
    %102 = vmatpush1.bf16.msra.mxu0 0
    %103 = vmatprep.subr.bf16.mxu0 0
    %104 = vmatpush1.bf16.msra.mxu0 0
    %105 = vmatprep.subr.bf16.mxu0 0
    %106 = vmatpush1.bf16.msra.mxu0 0
    %107 = vmatprep.subr.bf16.mxu0 0
    %108 = vmatpush1.bf16.msra.mxu0 0
    %109 = vmatprep.subr.bf16.mxu0 0
    %110 = vmatpush1.bf16.msra.mxu0 0
    %111 = vmatprep.subr.bf16.mxu0 0
    %112 = vmatpush1.bf16.msra.mxu0 0
    %113 = vmatprep.subr.bf16.mxu0 0
    %114 = vmatpush1.bf16.msra.mxu0 0
    %115 = vmatprep.subr.bf16.mxu0 0
    %116 = vmatpush1.bf16.msra.mxu0 0
    %117 = vmatprep.subr.bf16.mxu0 0
    %118 = vmatpush1.bf16.msra.mxu0 0
    %119 = vmatprep.subr.bf16.mxu0 0
    %120 = vmatpush1.bf16.msra.mxu0 0
    %121 = vmatprep.subr.bf16.mxu0 0
    %122 = vmatpush1.bf16.msra.mxu0 0
    %123 = vmatprep.subr.bf16.mxu0 0
    %124 = vmatpush1.bf16.msra.mxu0 0
    %125 = vmatprep.mubr.bf16.mxu0 0
    %126 = vmatmul.mubr.bf16.gmra.mrb[0].mxu0 %v91
    %v127 = vpop.f32.mrb[0].mxu0
    %v128 = vadd.f32 %v37, %v127
    %v129 = vpop.f32.mrb[0].mxu0
    %v130 = vadd.f32 %v41, %v129
    %v131 = vpop.f32.mrb[0].mxu0
    %v132 = vadd.f32 %v37, %v131
    %v133 = vpop.f32.mrb[0].mxu0
    %v134 = vadd.f32 %v41, %v133
    %135 = vdwg.mxu0
    %v136 = vmax.f32 %v128, 0.0
    %v137 = vmax.f32 %v130, 0.0
    %v138 = vmax.f32 %v132, 0.0
    %v139 = vmax.f32 %v134, 0.0
    %v140 = vpack.c.bf16 %v138, %v136
    %v141 = vpack.c.bf16 %v139, %v137
    %v142 = vld [vmem:[%s3] sm:$0xf]
    %v143 = vld [vmem:[%s3 + $0x4] sm:$0xf]
    %v144 = vld [vmem:[%s3 + $0x8] sm:$0xf]
    %v145 = vld [vmem:[%s3 + $0xc] sm:$0xf]
    %v146 = vld [vmem:[%s3 + $0x10] sm:$0xf]
    %v147 = vld [vmem:[%s3 + $0x14] sm:$0xf]
    %v148 = vld [vmem:[%s3 + $0x18] sm:$0xf]
    %v149 = vld [vmem:[%s3 + $0x1c] sm:$0xf]
    %v150 = vld [vmem:[%s3 + $0x20] sm:$0xf]
    %v151 = vld [vmem:[%s3 + $0x24] sm:$0xf]
    %v152 = vld [vmem:[%s3 + $0x28] sm:$0xf]
    %v153 = vld [vmem:[%s3 + $0x2c] sm:$0xf]
    %v154 = vld [vmem:[%s3 + $0x30] sm:$0xf]
    %v155 = vld [vmem:[%s3 + $0x34] sm:$0xf]
    %v156 = vld [vmem:[%s3 + $0x38] sm:$0xf]
    %v157 = vld [vmem:[%s3 + $0x3c] sm:$0xf]
    %v158 = vld [vmem:[%s3 + $0x40] sm:$0xf]
    %v159 = vld [vmem:[%s3 + $0x44] sm:$0xf]
    %v160 = vld [vmem:[%s3 + $0x48] sm:$0xf]
    %v161 = vld [vmem:[%s3 + $0x4c] sm:$0xf]
    %v162 = vld [vmem:[%s3 + $0x50] sm:$0xf]
    %v163 = vld [vmem:[%s3 + $0x54] sm:$0xf]
    %v164 = vld [vmem:[%s3 + $0x58] sm:$0xf]
    %v165 = vld [vmem:[%s3 + $0x5c] sm:$0xf]
    %v166 = vld [vmem:[%s3 + $0x60] sm:$0xf]
    %v167 = vld [vmem:[%s3 + $0x64] sm:$0xf]
    %v168 = vld [vmem:[%s3 + $0x68] sm:$0xf]
    %v169 = vld [vmem:[%s3 + $0x6c] sm:$0xf]
    %v170 = vld [vmem:[%s3 + $0x70] sm:$0xf]
    %v171 = vld [vmem:[%s3 + $0x74] sm:$0xf]
    %v172 = vld [vmem:[%s3 + $0x78] sm:$0xf]
    %v173 = vld [vmem:[%s3 + $0x7c] sm:$0xf]
    %v174 = vld [vmem:[%s4] sm:$0x1]
    %v176 = vlaneseq
    %v177 = vshrl.u32 %v176, 7
    %v178 = vsub.s32 0, %v177
    %v179 = vrot.slane %v174, %v178
    %v213 = vunpack.c.l.b16 %v142
    %v214 = vunpack.c.l.b16 %v143
    %v215 = vunpack.c.l.b16 %v144
    %v216 = vunpack.c.l.b16 %v145
    %v217 = vunpack.c.l.b16 %v146
    %v218 = vunpack.c.l.b16 %v147
    %v219 = vunpack.c.l.b16 %v148
    %v220 = vunpack.c.l.b16 %v149
    %v221 = vunpack.c.l.b16 %v150
    %v222 = vunpack.c.l.b16 %v151
    %v223 = vunpack.c.l.b16 %v152
    %v224 = vunpack.c.l.b16 %v153
    %v225 = vunpack.c.l.b16 %v154
    %v226 = vunpack.c.l.b16 %v155
    %v227 = vunpack.c.l.b16 %v156
    %v228 = vunpack.c.l.b16 %v157
    %v229 = vunpack.c.l.b16 %v158
    %v230 = vunpack.c.l.b16 %v159
    %v231 = vunpack.c.l.b16 %v160
    %v232 = vunpack.c.l.b16 %v161
    %v233 = vunpack.c.l.b16 %v162
    %v234 = vunpack.c.l.b16 %v163
    %v235 = vunpack.c.l.b16 %v164
    %v236 = vunpack.c.l.b16 %v165
    %v237 = vunpack.c.l.b16 %v166
    %v238 = vunpack.c.l.b16 %v167
    %v239 = vunpack.c.l.b16 %v168
    %v240 = vunpack.c.l.b16 %v169
    %v241 = vunpack.c.l.b16 %v170
    %v242 = vunpack.c.l.b16 %v171
    %v243 = vunpack.c.l.b16 %v172
    %v244 = vunpack.c.l.b16 %v173
    %v245 = vpack.c.b16 %v214, %v213
    %v246 = vpack.c.b16 %v216, %v215
    %v247 = vpack.c.b16 %v218, %v217
    %v248 = vpack.c.b16 %v220, %v219
    %v249 = vpack.c.b16 %v222, %v221
    %v250 = vpack.c.b16 %v224, %v223
    %v251 = vpack.c.b16 %v226, %v225
    %v252 = vpack.c.b16 %v228, %v227
    %v253 = vpack.c.b16 %v230, %v229
    %v254 = vpack.c.b16 %v232, %v231
    %v255 = vpack.c.b16 %v234, %v233
    %v256 = vpack.c.b16 %v236, %v235
    %v257 = vpack.c.b16 %v238, %v237
    %v258 = vpack.c.b16 %v240, %v239
    %v259 = vpack.c.b16 %v242, %v241
    %v260 = vpack.c.b16 %v244, %v243
    %277 = vmatprep.subr.bf16.mxu0 0
    %278 = vmatpush1.bf16.msra.mxu0 %v245
    %279 = vmatprep.subr.bf16.mxu0 0
    %280 = vmatpush1.bf16.msra.mxu0 %v246
    %281 = vmatprep.subr.bf16.mxu0 0
    %282 = vmatpush1.bf16.msra.mxu0 %v247
    %283 = vmatprep.subr.bf16.mxu0 0
    %284 = vmatpush1.bf16.msra.mxu0 %v248
    %285 = vmatprep.subr.bf16.mxu0 0
    %286 = vmatpush1.bf16.msra.mxu0 %v249
    %287 = vmatprep.subr.bf16.mxu0 0
    %288 = vmatpush1.bf16.msra.mxu0 %v250
    %289 = vmatprep.subr.bf16.mxu0 0
    %290 = vmatpush1.bf16.msra.mxu0 %v251
    %291 = vmatprep.subr.bf16.mxu0 0
    %292 = vmatpush1.bf16.msra.mxu0 %v252
    %293 = vmatprep.subr.bf16.mxu0 0
    %294 = vmatpush1.bf16.msra.mxu0 %v253
    %295 = vmatprep.subr.bf16.mxu0 0
    %296 = vmatpush1.bf16.msra.mxu0 %v254
    %297 = vmatprep.subr.bf16.mxu0 0
    %298 = vmatpush1.bf16.msra.mxu0 %v255
    %299 = vmatprep.subr.bf16.mxu0 0
    %300 = vmatpush1.bf16.msra.mxu0 %v256
    %301 = vmatprep.subr.bf16.mxu0 0
    %302 = vmatpush1.bf16.msra.mxu0 %v257
    %303 = vmatprep.subr.bf16.mxu0 0
    %304 = vmatpush1.bf16.msra.mxu0 %v258
    %305 = vmatprep.subr.bf16.mxu0 0
    %306 = vmatpush1.bf16.msra.mxu0 %v259
    %307 = vmatprep.subr.bf16.mxu0 0
    %308 = vmatpush1.bf16.msra.mxu0 %v260
    %309 = vmatprep.mubr.bf16.mxu0 %v141
    %310 = vmatmul.mubr.bf16.gmra.mrb[0].mxu0 %v140
    %v311 = vpop.f32.mrb[0].mxu0
    %v312 = vadd.f32 %v179, %v311
    %v313 = vpop.f32.mrb[0].mxu0
    %v314 = vpop.f32.mrb[0].mxu0
    %v315 = vadd.f32 %v179, %v314
    %v316 = vpop.f32.mrb[0].mxu0
    %317 = vdwg.mxu0
    %318 = vst.msk [vmem:[#allocation2] sm:$0xff] %vm89, %v312
    %319 = vst.msk [vmem:[#allocation2 + $0x8] sm:$0xff] %vm89, %v315
    // Predicated region
    $region22: #{tpu_custom_call.1} parent=1 // pred_check
      _
    $region23: #{tpu_custom_call.1} parent=1 // pred_check_branch
      %321 = sbr.rel (0) target = $region25
    $region24: #{tpu_custom_call.1} parent=1 // pred_region
      %s323 = ssub.s32 256, 256
      %324 = vsyncadd [#allocation3], %s323
      %s325 = sshll.u32 [#allocation2], 4
      %s326 = int_to_ptr.vmem [resolvable:$true] %s325
      %331 = dma.vmem_to_hbm [thread:$0]  %s326, 256, %s5, [#allocation3], 128, 128, 8
    $region25: #{tpu_custom_call.1} parent=1 // pred_fallthru
      _
    // Predicated region
    $region26: #{tpu_custom_call.1} parent=1 // pred_check
      _
    $region27: #{tpu_custom_call.1} parent=1 // pred_check_branch
      %333 = sbr.rel (0) target = $region29
    $region28: #{tpu_custom_call.1} parent=1 // pred_region
      %334 = dma.done [#allocation3], 256
    $region29: #{tpu_custom_call.1} parent=1 // pred_fallthru
      _
    %335 = vsyncpa [#allocation3], 1

</llo_original>
